<compile_context>
chip_gen: v5e
topology: v5e:2x2
jax: 0.10.0
libtpu: 0.0.40
codegen_flags: <defaults>
</compile_context>

<pallas_src>
import functools
import math

import jax
import jax.numpy as jnp
from jax.experimental import pallas as pl
from jax.experimental.pallas import tpu as pltpu

LANE = 128      # lane width: last dim alignment
SUBLANE = 8     # sublane width: second-to-last dim alignment


def _round_up(n: int, m: int) -> int:
    return ((n + m - 1) // m) * m


def _pad_to(arr, shape):
    pads = [(0, t - s) for s, t in zip(arr.shape, shape)]
    if all(p == (0, 0) for p in pads):
        return arr
    return jnp.pad(arr, pads)


# ----------------------------- Pallas kernel --------------------------------
def mlp_kernel(*refs, num_layers: int):
    """refs = (x_ref, w0_ref, b0_ref, ..., w{L-1}_ref, b{L-1}_ref, o_ref).

    Layer i: h = h @ W_i + b_i ; ReLU on every layer except the last.
    All refs are already f32 and lane-dense (widths are multiples of 128).
    """
    x_ref = refs[0]
    o_ref = refs[-1]
    param_refs = refs[1:-1]
    assert len(param_refs) == 2 * num_layers

    h = x_ref[...]                                   # (TB, in_pad) f32
    for i in range(num_layers):
        w = param_refs[2 * i][...]                   # (in_pad, out_pad)
        b = param_refs[2 * i + 1][...]               # (1, out_pad)
        h = jnp.dot(h, w, preferred_element_type=jnp.float32) + b
        if i < num_layers - 1:
            h = jnp.maximum(h, 0.0)                  # ReLU on all but last
    o_ref[...] = h.astype(o_ref.dtype)


# ------------------------------- wrapper -------------------------------------
def kernel_generator_mlp(x, weights, biases, *, block_b: int | None = None):
    """x: (B, input_dim); weights[i]: (in_i, out_i); biases[i]: (1, out_i).

    Pads all feature widths to multiples of 128 and the batch to a multiple of
    the batch block, runs the fused MLP kernel on a 1-D batch grid, and slices
    the result back to (B, out_dim).
    """
    num_layers = len(weights)
    assert len(biases) == num_layers
    B, in_dim = x.shape
    out_dim = weights[-1].shape[1]

    # Padded (lane-aligned) feature widths for every layer boundary.
    dims = [in_dim] + [w.shape[1] for w in weights]
    dims_pad = [_round_up(d, LANE) for d in dims]

    # Batch block: up to 256 rows per grid step, multiple of the sublane width.
    if block_b is None:
        block_b = min(_round_up(B, SUBLANE), 256)
    block_b = _round_up(block_b, SUBLANE)
    B_pad = _round_up(B, block_b)
    grid = (B_pad // block_b,)

    # Zero-pad operands (zeros are inert through matmul / bias-add / ReLU).
    x_p = _pad_to(x, (B_pad, dims_pad[0]))
    w_p = [_pad_to(w, (dims_pad[i], dims_pad[i + 1])) for i, w in enumerate(weights)]
    b_p = [_pad_to(b, (1, dims_pad[i + 1])) for i, b in enumerate(biases)]

    operands = [x_p]
    in_specs = [pl.BlockSpec((block_b, dims_pad[0]), lambda i: (i, 0))]
    for li in range(num_layers):
        operands.append(w_p[li])
        operands.append(b_p[li])
        in_specs.append(
            pl.BlockSpec((dims_pad[li], dims_pad[li + 1]), lambda i: (0, 0)))
        in_specs.append(
            pl.BlockSpec((1, dims_pad[li + 1]), lambda i: (0, 0)))
    out_spec = pl.BlockSpec((block_b, dims_pad[-1]), lambda i: (i, 0))

    # Advisory cost estimate so XLA can schedule around this tiny custom call.
    flops = 2 * B_pad * sum(dims_pad[i] * dims_pad[i + 1] for i in range(num_layers))
    param_bytes = sum(int(w.size) + int(b.size) for w, b in zip(w_p, b_p)) * 4
    io_bytes = (int(x_p.size) + B_pad * dims_pad[-1]) * 4
    cost = pl.CostEstimate(flops=flops, transcendentals=0,
                           bytes_accessed=param_bytes + io_bytes)

    # VMEM budget: params + double-buffered x/out blocks + activations, with
    # generous headroom; keeps the kernel valid on v7x's smaller 64 MiB VMEM.
    block_bytes = (block_b * dims_pad[0] + block_b * dims_pad[-1]) * 4
    act_bytes = block_b * max(dims_pad) * 4
    vmem_needed = param_bytes + 2 * block_bytes + 4 * act_bytes
    vmem_limit = min(max(4 * vmem_needed, 8 * 1024 * 1024), 48 * 1024 * 1024)

    out_pad = pl.pallas_call(
        functools.partial(mlp_kernel, num_layers=num_layers),
        out_shape=jax.ShapeDtypeStruct((B_pad, dims_pad[-1]), x.dtype),
        grid=grid,
        in_specs=in_specs,
        out_specs=out_spec,
        cost_estimate=cost,
        compiler_params=pltpu.CompilerParams(
            dimension_semantics=("parallel",),      # megacore batch sharding on v7x
            vmem_limit_bytes=vmem_limit,
        ),
    )(*operands)

    return out_pad[:B, :out_dim]


# --------------------------- parameter construction --------------------------
def init_linear(key, in_features, out_features, dtype=jnp.float32):
    """Init mimicking torch.nn.Linear defaults: U(-1/sqrt(in), 1/sqrt(in))."""
    kw, kb = jax.random.split(key)
    bound = 1.0 / math.sqrt(in_features)
    # Stored already transposed: (in, out) so kernel does h @ W + b.
    w = jax.random.uniform(kw, (in_features, out_features), dtype,
                           minval=-bound, maxval=bound)
    b = jax.random.uniform(kb, (1, out_features), dtype,
                           minval=-bound, maxval=bound)
    return w, b


def build_params(key, input_dim, hidden_dim, num_kernels, kernel_sizes):
    last_dim = sum(k * k * c * n
                   for k, c, n in zip(kernel_sizes, [1] + num_kernels[:-1], num_kernels))
    dims = [input_dim] + list(hidden_dim) + [last_dim]
    weights, biases = [], []
    for i in range(len(dims) - 1):
        key, sub = jax.random.split(key)
        w, b = init_linear(sub, dims[i], dims[i + 1])
        weights.append(w)
        biases.append(b)
    return weights, biases, last_dim


# --------------------------------- reference ---------------------------------
def mlp_reference(x, weights, biases):
    h = x
    n = len(weights)
    for i, (w, b) in enumerate(zip(weights, biases)):
        h = h @ w + b
        if i < n - 1:
            h = jnp.maximum(h, 0.0)
    return h


# ----------------------------------- main ------------------------------------
if __name__ == "__main__":
    # Module hyper-parameters (small, consistent with the constructor signature)
    input_dim = 32
    hidden_dim = [64, 48]
    num_kernels = [4, 8]
    kernel_sizes = [3, 3]
    batch = 8

    key = jax.random.PRNGKey(0)
    key, kx, kp = jax.random.split(key, 3)

    weights, biases, out_dim = build_params(kp, input_dim, hidden_dim,
                                            num_kernels, kernel_sizes)
    x = jax.random.normal(kx, (batch, input_dim), dtype=jnp.float32)

    out = kernel_generator_mlp(x, weights, biases)
    out = jax.block_until_ready(out)

    ref = mlp_reference(x, weights, biases)
    assert out.shape == (batch, out_dim), (out.shape, (batch, out_dim))
    assert jnp.allclose(out, ref, atol=1e-4, rtol=1e-4), "mismatch vs reference"

    print("KERNEL_OK")
</pallas_src>

<mosaic_0001>
module attributes {stable_mosaic.version = 11 : i64} {
  func.func @mlp_kernel(%arg0: i32, %arg1: memref<8x128xf32, #tpu.memory_space<vmem>>, %arg2: memref<128x128xf32, #tpu.memory_space<vmem>>, %arg3: memref<1x128xf32, #tpu.memory_space<vmem>>, %arg4: memref<128x128xf32, #tpu.memory_space<vmem>>, %arg5: memref<1x128xf32, #tpu.memory_space<vmem>>, %arg6: memref<128x384xf32, #tpu.memory_space<vmem>>, %arg7: memref<1x384xf32, #tpu.memory_space<vmem>>, %arg8: memref<8x384xf32, #tpu.memory_space<vmem>>) attributes {dimension_semantics = [#tpu.dimension_semantics<parallel>], iteration_bounds = array<i64: 1>, scalar_prefetch = 0 : i64, scratch_operands = 0 : i64, tpu.core_type = #tpu.core_type<tc>, window_params = [{transform_indices = @transform_0, window_bounds = array<i64: 8, 128>}, {pipeline_mode = #tpu.pipeline_mode<synchronous>, transform_indices = @transform_1, window_bounds = array<i64: 128, 128>}, {pipeline_mode = #tpu.pipeline_mode<synchronous>, transform_indices = @transform_2, window_bounds = array<i64: 1, 128>}, {pipeline_mode = #tpu.pipeline_mode<synchronous>, transform_indices = @transform_3, window_bounds = array<i64: 128, 128>}, {pipeline_mode = #tpu.pipeline_mode<synchronous>, transform_indices = @transform_4, window_bounds = array<i64: 1, 128>}, {pipeline_mode = #tpu.pipeline_mode<synchronous>, transform_indices = @transform_5, window_bounds = array<i64: 128, 384>}, {pipeline_mode = #tpu.pipeline_mode<synchronous>, transform_indices = @transform_6, window_bounds = array<i64: 1, 384>}, {transform_indices = @transform_7, window_bounds = array<i64: 8, 384>}]} {
    %c0 = arith.constant 0 : index
    %c0_0 = arith.constant 0 : index
    %0 = vector.load %arg1[%c0, %c0_0] : memref<8x128xf32, #tpu.memory_space<vmem>>, vector<8x128xf32>
    %c0_1 = arith.constant 0 : index
    %c0_2 = arith.constant 0 : index
    %1 = vector.load %arg2[%c0_1, %c0_2] : memref<128x128xf32, #tpu.memory_space<vmem>>, vector<128x128xf32>
    %c0_3 = arith.constant 0 : index
    %c0_4 = arith.constant 0 : index
    %2 = vector.load %arg3[%c0_3, %c0_4] : memref<1x128xf32, #tpu.memory_space<vmem>>, vector<1x128xf32>
    %cst = arith.constant dense<0.000000e+00> : vector<8x128xf32>
    %3 = tpu.matmul %0, %1, %cst {dimension_numbers = #tpu.dot_dimension_numbers<[1], [0], [0], [1], [0, 0, 1, 1], [], []>} : vector<8x128xf32>, vector<128x128xf32>, vector<8x128xf32> -> vector<8x128xf32>
    %4 = vector.broadcast %2 : vector<1x128xf32> to vector<8x128xf32>
    %5 = arith.addf %3, %4 : vector<8x128xf32>
    %cst_5 = arith.constant 0.000000e+00 : f32
    %6 = vector.broadcast %cst_5 : f32 to vector<8x128xf32>
    %7 = arith.maximumf %5, %6 : vector<8x128xf32>
    %c0_6 = arith.constant 0 : index
    %c0_7 = arith.constant 0 : index
    %8 = vector.load %arg4[%c0_6, %c0_7] : memref<128x128xf32, #tpu.memory_space<vmem>>, vector<128x128xf32>
    %c0_8 = arith.constant 0 : index
    %c0_9 = arith.constant 0 : index
    %9 = vector.load %arg5[%c0_8, %c0_9] : memref<1x128xf32, #tpu.memory_space<vmem>>, vector<1x128xf32>
    %cst_10 = arith.constant dense<0.000000e+00> : vector<8x128xf32>
    %10 = tpu.matmul %7, %8, %cst_10 {dimension_numbers = #tpu.dot_dimension_numbers<[1], [0], [0], [1], [0, 0, 1, 1], [], []>} : vector<8x128xf32>, vector<128x128xf32>, vector<8x128xf32> -> vector<8x128xf32>
    %11 = vector.broadcast %9 : vector<1x128xf32> to vector<8x128xf32>
    %12 = arith.addf %10, %11 : vector<8x128xf32>
    %cst_11 = arith.constant 0.000000e+00 : f32
    %13 = vector.broadcast %cst_11 : f32 to vector<8x128xf32>
    %14 = arith.maximumf %12, %13 : vector<8x128xf32>
    %c0_12 = arith.constant 0 : index
    %c0_13 = arith.constant 0 : index
    %15 = vector.load %arg6[%c0_12, %c0_13] : memref<128x384xf32, #tpu.memory_space<vmem>>, vector<128x384xf32>
    %c0_14 = arith.constant 0 : index
    %c0_15 = arith.constant 0 : index
    %16 = vector.load %arg7[%c0_14, %c0_15] : memref<1x384xf32, #tpu.memory_space<vmem>>, vector<1x384xf32>
    %cst_16 = arith.constant dense<0.000000e+00> : vector<8x384xf32>
    %17 = tpu.matmul %14, %15, %cst_16 {dimension_numbers = #tpu.dot_dimension_numbers<[1], [0], [0], [1], [0, 0, 1, 1], [], []>} : vector<8x128xf32>, vector<128x384xf32>, vector<8x384xf32> -> vector<8x384xf32>
    %18 = vector.broadcast %16 : vector<1x384xf32> to vector<8x384xf32>
    %19 = arith.addf %17, %18 : vector<8x384xf32>
    %c0_17 = arith.constant 0 : index
    %c0_18 = arith.constant 0 : index
    %20 = vector.load %arg8[%c0_17, %c0_18] : memref<8x384xf32, #tpu.memory_space<vmem>>, vector<8x384xf32>
    tpu.vector_store %arg8[%c0_17, %c0_18], %19 {strides = array<i32>} : memref<8x384xf32, #tpu.memory_space<vmem>>, vector<8x384xf32>,
    return
  }
  func.func @transform_0(%arg0: i32) -> (i32, i32) {
    %c0_i32 = arith.constant 0 : i32
    %c0_i32_0 = arith.constant 0 : i32
    return %arg0, %c0_i32 : i32, i32
  }
  func.func @transform_1(%arg0: i32) -> (i32, i32) {
    %c0_i32 = arith.constant 0 : i32
    %c0_i32_0 = arith.constant 0 : i32
    %c0_i32_1 = arith.constant 0 : i32
    return %c0_i32, %c0_i32_0 : i32, i32
  }
  func.func @transform_2(%arg0: i32) -> (i32, i32) {
    %c0_i32 = arith.constant 0 : i32
    %c0_i32_0 = arith.constant 0 : i32
    %c0_i32_1 = arith.constant 0 : i32
    return %c0_i32, %c0_i32_0 : i32, i32
  }
  func.func @transform_3(%arg0: i32) -> (i32, i32) {
    %c0_i32 = arith.constant 0 : i32
    %c0_i32_0 = arith.constant 0 : i32
    %c0_i32_1 = arith.constant 0 : i32
    return %c0_i32, %c0_i32_0 : i32, i32
  }
  func.func @transform_4(%arg0: i32) -> (i32, i32) {
    %c0_i32 = arith.constant 0 : i32
    %c0_i32_0 = arith.constant 0 : i32
    %c0_i32_1 = arith.constant 0 : i32
    return %c0_i32, %c0_i32_0 : i32, i32
  }
  func.func @transform_5(%arg0: i32) -> (i32, i32) {
    %c0_i32 = arith.constant 0 : i32
    %c0_i32_0 = arith.constant 0 : i32
    %c0_i32_1 = arith.constant 0 : i32
    return %c0_i32, %c0_i32_0 : i32, i32
  }
  func.func @transform_6(%arg0: i32) -> (i32, i32) {
    %c0_i32 = arith.constant 0 : i32
    %c0_i32_0 = arith.constant 0 : i32
    %c0_i32_1 = arith.constant 0 : i32
    return %c0_i32, %c0_i32_0 : i32, i32
  }
  func.func @transform_7(%arg0: i32) -> (i32, i32) {
    %c0_i32 = arith.constant 0 : i32
    %c0_i32_0 = arith.constant 0 : i32
    return %arg0, %c0_i32 : i32, i32
  }
}

</mosaic_0001>

<llo_original>
// kernel: tpu_custom_call.1
$region0: #{tpu_custom_call.1}
  #allocation0 [shape = 'u32[]', space=smem, size = 0x4, offset = 0x4, fixed_abs, tag = 'smem constant byte address 0x4 - core index']
  #allocation1 [shape = 'u32[72,128]{1,0:T(1,128)}', space=vmem, size = 0x9000, scoped, tag = 'internal scratch']
  %s0 = inlined_call_operand.hbm [shape: f32[8,128], index: 0, kind: input, shape index: {}]
  %s1 = inlined_call_operand.hbm [shape: f32[128,128], index: 1, kind: input, shape index: {}]
  %s2 = inlined_call_operand.vmem [shape: f32[1,128], index: 2, kind: input, shape index: {}]
  %s3 = inlined_call_operand.hbm [shape: f32[128,128], index: 3, kind: input, shape index: {}]
  %s4 = inlined_call_operand.vmem [shape: f32[1,128], index: 4, kind: input, shape index: {}]
  %s5 = inlined_call_operand.hbm [shape: f32[128,384], index: 5, kind: input, shape index: {}]
  %s6 = inlined_call_operand.vmem [shape: f32[1,384], index: 6, kind: input, shape index: {}]
  %s7 = inlined_call_operand.hbm [shape: f32[8,384], index: 7, kind: output, shape index: {}]
  %s8 = sld [smem:[#allocation0]]
  $region54: #{tpu_custom_call.1} parent=0
    _
  %s10 = ssub.s32 1, %s8
  %s11 = scalar_select 0, %s10, %s8
  $region1: #{tpu_custom_call.1} parent=0
    #allocation2 [shape = 'u8[4096]{0}', space=vmem, size = 0x1000, scoped, tag = 'input window, operand 0, single buffered']
    #allocation3 [shape = 's32[1]{0}', space=sflag, size = 0x4, scoped, tag = 'scoped memory for tpu_custom_call.1']
    #allocation4 [shape = 's32[1]{0}', space=sflag, size = 0x4, scoped, tag = 'scoped memory for tpu_custom_call.1']
    #allocation5 [shape = 'u8[65536]{0}', space=vmem, size = 0x10000, scoped, tag = 'input window, operand 1, single buffered']
    #allocation6 [shape = 's32[1]{0}', space=sflag, size = 0x4, scoped, tag = 'scoped memory for tpu_custom_call.1']
    #allocation7 [shape = 'u8[65536]{0}', space=vmem, size = 0x10000, scoped, tag = 'input window, operand 3, single buffered']
    #allocation8 [shape = 'u8[196608]{0}', space=vmem, size = 0x30000, scoped, tag = 'input window, operand 5, single buffered']
    #allocation9 [shape = 's32[1]{0}', space=sflag, size = 0x4, scoped, tag = 'scoped memory for tpu_custom_call.1']
    #allocation10 [shape = 'u8[12288]{0}', space=vmem, size = 0x3000, scoped, tag = 'output window, operand 0, single buffered']
    %12 = vsyncpa [#allocation3], 0
    %13 = vsyncpa [#allocation6], 0
    %14 = vsyncpa [#allocation9], 0
    %15 = vsyncpa [#allocation4], 0
    // Predicated region
    $region2: #{tpu_custom_call.1} parent=1 // pred_check
      _
    $region3: #{tpu_custom_call.1} parent=1 // pred_check_branch
      %17 = sbr.rel (0) target = $region5
    $region4: #{tpu_custom_call.1} parent=1 // pred_region
      %19 = vsyncadd [#allocation3], 0
      %s21 = sshll.u32 %s0, 4
      %s22 = int_to_ptr.hbm [resolvable:$true] %s21
      %s23 = sshll.u32 [#allocation2], 4
      %s24 = int_to_ptr.vmem [resolvable:$true] %s23
      %26 = dma.hbm_to_vmem [thread:$0]  %s22, 128, %s24, [#allocation3]
    $region5: #{tpu_custom_call.1} parent=1 // pred_fallthru
      _
    // Predicated region
    $region6: #{tpu_custom_call.1} parent=1 // pred_check
      _
    $region7: #{tpu_custom_call.1} parent=1 // pred_check_branch
      %28 = sbr.rel (0) target = $region9
    $region8: #{tpu_custom_call.1} parent=1 // pred_region
      %30 = vsyncadd [#allocation6], 0
      %s31 = sshll.u32 %s1, 4
      %s32 = int_to_ptr.hbm [resolvable:$true] %s31
      %s33 = sshll.u32 [#allocation5], 4
      %s34 = int_to_ptr.vmem [resolvable:$true] %s33
      %39 = dma.hbm_to_vmem [thread:$0]  %s32, 2048, %s34, [#allocation6], 128, 128, 8
    $region9: #{tpu_custom_call.1} parent=1 // pred_fallthru
      _
    // Predicated region
    $region10: #{tpu_custom_call.1} parent=1 // pred_check
      _
    $region11: #{tpu_custom_call.1} parent=1 // pred_check_branch
      %41 = sbr.rel (0) target = $region13
    $region12: #{tpu_custom_call.1} parent=1 // pred_region
      _
    $region13: #{tpu_custom_call.1} parent=1 // pred_fallthru
      _
    // Predicated region
    $region14: #{tpu_custom_call.1} parent=1 // pred_check
      _
    $region15: #{tpu_custom_call.1} parent=1 // pred_check_branch
      %43 = sbr.rel (0) target = $region17
    $region16: #{tpu_custom_call.1} parent=1 // pred_region
      %45 = vsyncadd [#allocation6], 0
      %s46 = sshll.u32 %s3, 4
      %s47 = int_to_ptr.hbm [resolvable:$true] %s46
      %s48 = sshll.u32 [#allocation7], 4
      %s49 = int_to_ptr.vmem [resolvable:$true] %s48
      %54 = dma.hbm_to_vmem [thread:$0]  %s47, 2048, %s49, [#allocation6], 128, 128, 8
    $region17: #{tpu_custom_call.1} parent=1 // pred_fallthru
      _
    // Predicated region
    $region18: #{tpu_custom_call.1} parent=1 // pred_check
      _
    $region19: #{tpu_custom_call.1} parent=1 // pred_check_branch
      %56 = sbr.rel (0) target = $region21
    $region20: #{tpu_custom_call.1} parent=1 // pred_region
      _
    $region21: #{tpu_custom_call.1} parent=1 // pred_fallthru
      _
    // Predicated region
    $region22: #{tpu_custom_call.1} parent=1 // pred_check
      _
    $region23: #{tpu_custom_call.1} parent=1 // pred_check_branch
      %58 = sbr.rel (0) target = $region25
    $region24: #{tpu_custom_call.1} parent=1 // pred_region
      %60 = vsyncadd [#allocation9], 0
      %s61 = sshll.u32 %s5, 4
      %s62 = int_to_ptr.hbm [resolvable:$true] %s61
      %s63 = sshll.u32 [#allocation8], 4
      %s64 = int_to_ptr.vmem [resolvable:$true] %s63
      %69 = dma.hbm_to_vmem [thread:$0]  %s62, 6144, %s64, [#allocation9], 384, 384, 24
    $region25: #{tpu_custom_call.1} parent=1 // pred_fallthru
      _
    // Predicated region
    $region26: #{tpu_custom_call.1} parent=1 // pred_check
      _
    $region27: #{tpu_custom_call.1} parent=1 // pred_check_branch
      %71 = sbr.rel (0) target = $region29
    $region28: #{tpu_custom_call.1} parent=1 // pred_region
      _
    $region29: #{tpu_custom_call.1} parent=1 // pred_fallthru
      _
    // Predicated region
    $region30: #{tpu_custom_call.1} parent=1 // pred_check
      _
    $region31: #{tpu_custom_call.1} parent=1 // pred_check_branch
      %73 = sbr.rel (0) target = $region33
    $region32: #{tpu_custom_call.1} parent=1 // pred_region
      %75 = dma.done [#allocation3], 128
    $region33: #{tpu_custom_call.1} parent=1 // pred_fallthru
      _
    // Predicated region
    $region34: #{tpu_custom_call.1} parent=1 // pred_check
      _
    $region35: #{tpu_custom_call.1} parent=1 // pred_check_branch
      %77 = sbr.rel (0) target = $region37
    $region36: #{tpu_custom_call.1} parent=1 // pred_region
      %79 = dma.done [#allocation6], 2048
    $region37: #{tpu_custom_call.1} parent=1 // pred_fallthru
      _
    // Predicated region
    $region38: #{tpu_custom_call.1} parent=1 // pred_check
      _
    $region39: #{tpu_custom_call.1} parent=1 // pred_check_branch
      %81 = sbr.rel (0) target = $region41
    $region40: #{tpu_custom_call.1} parent=1 // pred_region
      %83 = dma.done [#allocation6], 2048
    $region41: #{tpu_custom_call.1} parent=1 // pred_fallthru
      _
    // Predicated region
    $region42: #{tpu_custom_call.1} parent=1 // pred_check
      _
    $region43: #{tpu_custom_call.1} parent=1 // pred_check_branch
      %85 = sbr.rel (0) target = $region45
    $region44: #{tpu_custom_call.1} parent=1 // pred_region
      %87 = dma.done [#allocation9], 6144
    $region45: #{tpu_custom_call.1} parent=1 // pred_fallthru
      _
    %v88 = vld [vmem:[#allocation2] sm:$0xff]
    %v89 = vld [vmem:[#allocation5] sm:$0xff]
    %v90 = vld [vmem:[#allocation5 + $0x8] sm:$0xff]
    %v91 = vld [vmem:[#allocation5 + $0x10] sm:$0xff]
    %v92 = vld [vmem:[#allocation5 + $0x18] sm:$0xff]
    %v93 = vld [vmem:[#allocation5 + $0x20] sm:$0xff]
    %v94 = vld [vmem:[#allocation5 + $0x28] sm:$0xff]
    %v95 = vld [vmem:[#allocation5 + $0x30] sm:$0xff]
    %v96 = vld [vmem:[#allocation5 + $0x38] sm:$0xff]
    %v97 = vld [vmem:[#allocation5 + $0x40] sm:$0xff]
    %v98 = vld [vmem:[#allocation5 + $0x48] sm:$0xff]
    %v99 = vld [vmem:[#allocation5 + $0x50] sm:$0xff]
    %v100 = vld [vmem:[#allocation5 + $0x58] sm:$0xff]
    %v101 = vld [vmem:[#allocation5 + $0x60] sm:$0xff]
    %v102 = vld [vmem:[#allocation5 + $0x68] sm:$0xff]
    %v103 = vld [vmem:[#allocation5 + $0x70] sm:$0xff]
    %v104 = vld [vmem:[#allocation5 + $0x78] sm:$0xff]
    %v105 = vld [vmem:[%s2] sm:$0x1]
    %v107 = vperm.slane %v105, 0
    %109 = vmatpush.msra.mxu0 %v104
    %110 = vmatpush.msra.mxu0 %v103
    %111 = vmatpush.msra.mxu0 %v102
    %112 = vmatpush.msra.mxu0 %v101
    %113 = vmatpush.msra.mxu0 %v100
    %114 = vmatpush.msra.mxu0 %v99
    %115 = vmatpush.msra.mxu0 %v98
    %116 = vmatpush.msra.mxu0 %v97
    %117 = vmatpush.msra.mxu0 %v96
    %118 = vmatpush.msra.mxu0 %v95
    %119 = vmatpush.msra.mxu0 %v94
    %120 = vmatpush.msra.mxu0 %v93
    %121 = vmatpush.msra.mxu0 %v92
    %122 = vmatpush.msra.mxu0 %v91
    %123 = vmatpush.msra.mxu0 %v90
    %124 = vmatpush.msra.mxu0 %v89
    %125 = vmatmul.f32.gmra.mxu0 %v88
    %v126 = vpop.f32.mrf.mxu0
    %v127 = vadd.f32 %v107, %v126
    %128 = vdwg.mxu0
    %v129 = vmax.f32 %v127, 0.0
    %v130 = vld [vmem:[#allocation7] sm:$0xff]
    %v131 = vld [vmem:[#allocation7 + $0x8] sm:$0xff]
    %v132 = vld [vmem:[#allocation7 + $0x10] sm:$0xff]
    %v133 = vld [vmem:[#allocation7 + $0x18] sm:$0xff]
    %v134 = vld [vmem:[#allocation7 + $0x20] sm:$0xff]
    %v135 = vld [vmem:[#allocation7 + $0x28] sm:$0xff]
    %v136 = vld [vmem:[#allocation7 + $0x30] sm:$0xff]
    %v137 = vld [vmem:[#allocation7 + $0x38] sm:$0xff]
    %v138 = vld [vmem:[#allocation7 + $0x40] sm:$0xff]
    %v139 = vld [vmem:[#allocation7 + $0x48] sm:$0xff]
    %v140 = vld [vmem:[#allocation7 + $0x50] sm:$0xff]
    %v141 = vld [vmem:[#allocation7 + $0x58] sm:$0xff]
    %v142 = vld [vmem:[#allocation7 + $0x60] sm:$0xff]
    %v143 = vld [vmem:[#allocation7 + $0x68] sm:$0xff]
    %v144 = vld [vmem:[#allocation7 + $0x70] sm:$0xff]
    %v145 = vld [vmem:[#allocation7 + $0x78] sm:$0xff]
    %v146 = vld [vmem:[%s4] sm:$0x1]
    %v148 = vperm.slane %v146, 0
    %150 = vmatpush.msra.mxu0 %v145
    %151 = vmatpush.msra.mxu0 %v144
    %152 = vmatpush.msra.mxu0 %v143
    %153 = vmatpush.msra.mxu0 %v142
    %154 = vmatpush.msra.mxu0 %v141
    %155 = vmatpush.msra.mxu0 %v140
    %156 = vmatpush.msra.mxu0 %v139
    %157 = vmatpush.msra.mxu0 %v138
    %158 = vmatpush.msra.mxu0 %v137
    %159 = vmatpush.msra.mxu0 %v136
    %160 = vmatpush.msra.mxu0 %v135
    %161 = vmatpush.msra.mxu0 %v134
    %162 = vmatpush.msra.mxu0 %v133
    %163 = vmatpush.msra.mxu0 %v132
    %164 = vmatpush.msra.mxu0 %v131
    %165 = vmatpush.msra.mxu0 %v130
    %166 = vmatmul.f32.gmra.mxu0 %v129
    %v167 = vpop.f32.mrf.mxu0
    %v168 = vadd.f32 %v148, %v167
    %169 = vdwg.mxu0
    %v170 = vmax.f32 %v168, 0.0
    %v171 = vld [vmem:[#allocation8] sm:$0xff]
    %v172 = vld [vmem:[#allocation8 + $0x8] sm:$0xff]
    %v173 = vld [vmem:[#allocation8 + $0x10] sm:$0xff]
    %v174 = vld [vmem:[#allocation8 + $0x18] sm:$0xff]
    %v175 = vld [vmem:[#allocation8 + $0x20] sm:$0xff]
    %v176 = vld [vmem:[#allocation8 + $0x28] sm:$0xff]
    %v177 = vld [vmem:[#allocation8 + $0x30] sm:$0xff]
    %v178 = vld [vmem:[#allocation8 + $0x38] sm:$0xff]
    %v179 = vld [vmem:[#allocation8 + $0x40] sm:$0xff]
    %v180 = vld [vmem:[#allocation8 + $0x48] sm:$0xff]
    %v181 = vld [vmem:[#allocation8 + $0x50] sm:$0xff]
    %v182 = vld [vmem:[#allocation8 + $0x58] sm:$0xff]
    %v183 = vld [vmem:[#allocation8 + $0x60] sm:$0xff]
    %v184 = vld [vmem:[#allocation8 + $0x68] sm:$0xff]
    %v185 = vld [vmem:[#allocation8 + $0x70] sm:$0xff]
    %v186 = vld [vmem:[#allocation8 + $0x78] sm:$0xff]
    %v187 = vld [vmem:[#allocation8 + $0x80] sm:$0xff]
    %v188 = vld [vmem:[#allocation8 + $0x88] sm:$0xff]
    %v189 = vld [vmem:[#allocation8 + $0x90] sm:$0xff]
    %v190 = vld [vmem:[#allocation8 + $0x98] sm:$0xff]
    %v191 = vld [vmem:[#allocation8 + $0xa0] sm:$0xff]
    %v192 = vld [vmem:[#allocation8 + $0xa8] sm:$0xff]
    %v193 = vld [vmem:[#allocation8 + $0xb0] sm:$0xff]
    %v194 = vld [vmem:[#allocation8 + $0xb8] sm:$0xff]
    %v195 = vld [vmem:[#allocation8 + $0xc0] sm:$0xff]
    %v196 = vld [vmem:[#allocation8 + $0xc8] sm:$0xff]
    %v197 = vld [vmem:[#allocation8 + $0xd0] sm:$0xff]
    %v198 = vld [vmem:[#allocation8 + $0xd8] sm:$0xff]
    %v199 = vld [vmem:[#allocation8 + $0xe0] sm:$0xff]
    %v200 = vld [vmem:[#allocation8 + $0xe8] sm:$0xff]
    %v201 = vld [vmem:[#allocation8 + $0xf0] sm:$0xff]
    %v202 = vld [vmem:[#allocation8 + $0xf8] sm:$0xff]
    %v203 = vld [vmem:[#allocation8 + $0x100] sm:$0xff]
    %v204 = vld [vmem:[#allocation8 + $0x108] sm:$0xff]
    %v205 = vld [vmem:[#allocation8 + $0x110] sm:$0xff]
    %v206 = vld [vmem:[#allocation8 + $0x118] sm:$0xff]
    %v207 = vld [vmem:[#allocation8 + $0x120] sm:$0xff]
    %v208 = vld [vmem:[#allocation8 + $0x128] sm:$0xff]
    %v209 = vld [vmem:[#allocation8 + $0x130] sm:$0xff]
    %v210 = vld [vmem:[#allocation8 + $0x138] sm:$0xff]
    %v211 = vld [vmem:[#allocation8 + $0x140] sm:$0xff]
    %v212 = vld [vmem:[#allocation8 + $0x148] sm:$0xff]
    %v213 = vld [vmem:[#allocation8 + $0x150] sm:$0xff]
    %v214 = vld [vmem:[#allocation8 + $0x158] sm:$0xff]
    %v215 = vld [vmem:[#allocation8 + $0x160] sm:$0xff]
    %v216 = vld [vmem:[#allocation8 + $0x168] sm:$0xff]
    %v217 = vld [vmem:[#allocation8 + $0x170] sm:$0xff]
    %v218 = vld [vmem:[#allocation8 + $0x178] sm:$0xff]
    %v219 = vld [vmem:[%s6] sm:$0x7]
    %v221 = vperm.slane %v219, 0
    %v222 = vperm.slane %v219, 1
    %v223 = vperm.slane %v219, 2
    %227 = vmatpush.msra.mxu0 %v216
    %228 = vmatpush.msra.mxu0 %v213
    %229 = vmatpush.msra.mxu0 %v210
    %230 = vmatpush.msra.mxu0 %v207
    %231 = vmatpush.msra.mxu0 %v204
    %232 = vmatpush.msra.mxu0 %v201
    %233 = vmatpush.msra.mxu0 %v198
    %234 = vmatpush.msra.mxu0 %v195
    %235 = vmatpush.msra.mxu0 %v192
    %236 = vmatpush.msra.mxu0 %v189
    %237 = vmatpush.msra.mxu0 %v186
    %238 = vmatpush.msra.mxu0 %v183
    %239 = vmatpush.msra.mxu0 %v180
    %240 = vmatpush.msra.mxu0 %v177
    %241 = vmatpush.msra.mxu0 %v174
    %242 = vmatpush.msra.mxu0 %v171
    %243 = vmatmul.f32.gmra.mxu0 %v170
    %v244 = vpop.f32.mrf.mxu0
    %v245 = vadd.f32 %v221, %v244
    %246 = vdwg.mxu0
    %247 = vmatpush.msra.mxu0 %v217
    %248 = vmatpush.msra.mxu0 %v214
    %249 = vmatpush.msra.mxu0 %v211
    %250 = vmatpush.msra.mxu0 %v208
    %251 = vmatpush.msra.mxu0 %v205
    %252 = vmatpush.msra.mxu0 %v202
    %253 = vmatpush.msra.mxu0 %v199
    %254 = vmatpush.msra.mxu0 %v196
    %255 = vmatpush.msra.mxu0 %v193
    %256 = vmatpush.msra.mxu0 %v190
    %257 = vmatpush.msra.mxu0 %v187
    %258 = vmatpush.msra.mxu0 %v184
    %259 = vmatpush.msra.mxu0 %v181
    %260 = vmatpush.msra.mxu0 %v178
    %261 = vmatpush.msra.mxu0 %v175
    %262 = vmatpush.msra.mxu0 %v172
    %263 = vmatmul.f32.gmra.mxu0 %v170
    %v264 = vpop.f32.mrf.mxu0
    %v265 = vadd.f32 %v222, %v264
    %266 = vdwg.mxu0
    %267 = vmatpush.msra.mxu0 %v218
    %268 = vmatpush.msra.mxu0 %v215
    %269 = vmatpush.msra.mxu0 %v212
    %270 = vmatpush.msra.mxu0 %v209
    %271 = vmatpush.msra.mxu0 %v206
    %272 = vmatpush.msra.mxu0 %v203
    %273 = vmatpush.msra.mxu0 %v200
    %274 = vmatpush.msra.mxu0 %v197
    %275 = vmatpush.msra.mxu0 %v194
    %276 = vmatpush.msra.mxu0 %v191
    %277 = vmatpush.msra.mxu0 %v188
    %278 = vmatpush.msra.mxu0 %v185
    %279 = vmatpush.msra.mxu0 %v182
    %280 = vmatpush.msra.mxu0 %v179
    %281 = vmatpush.msra.mxu0 %v176
    %282 = vmatpush.msra.mxu0 %v173
    %283 = vmatmul.f32.gmra.mxu0 %v170
    %v284 = vpop.f32.mrf.mxu0
    %v285 = vadd.f32 %v223, %v284
    %286 = vdwg.mxu0
    %287 = vst [vmem:[#allocation10] sm:$0xff] %v245
    %288 = vst [vmem:[#allocation10 + $0x8] sm:$0xff] %v265
    %289 = vst [vmem:[#allocation10 + $0x10] sm:$0xff] %v285
    // Predicated region
    $region46: #{tpu_custom_call.1} parent=1 // pred_check
      _
    $region47: #{tpu_custom_call.1} parent=1 // pred_check_branch
      %291 = sbr.rel (0) target = $region49
    $region48: #{tpu_custom_call.1} parent=1 // pred_region
      %293 = vsyncadd [#allocation4], 0
      %s295 = sshll.u32 [#allocation10], 4
      %s296 = int_to_ptr.vmem [resolvable:$true] %s295
      %s297 = sshll.u32 %s7, 4
      %s298 = int_to_ptr.hbm [resolvable:$true] %s297
      %300 = dma.vmem_to_hbm [thread:$0]  %s296, 384, %s298, [#allocation4]
    $region49: #{tpu_custom_call.1} parent=1 // pred_fallthru
      _
    // Predicated region
    $region50: #{tpu_custom_call.1} parent=1 // pred_check
      _
    $region51: #{tpu_custom_call.1} parent=1 // pred_check_branch
      %302 = sbr.rel (0) target = $region53
    $region52: #{tpu_custom_call.1} parent=1 // pred_region
      %304 = dma.done [#allocation4], 384
    $region53: #{tpu_custom_call.1} parent=1 // pred_fallthru
      _
    %305 = vsyncpa [#allocation3], 1
    %306 = vsyncpa [#allocation6], 1
    %307 = vsyncpa [#allocation9], 1
    %308 = vsyncpa [#allocation4], 1

</llo_original>
